<compile_context>
chip_gen: v7x
topology: tpu7x:2x2x1
jax: 0.10.0
libtpu: 0.0.40
codegen_flags: <defaults>
</compile_context>

<pallas_src>
import math

import jax
import jax.numpy as jnp
from jax import lax
from jax.experimental import pallas as pl
from jax.experimental.pallas import tpu as pltpu


# ---------------------------------------------------------------------------
# helpers
# ---------------------------------------------------------------------------
def _round_up(x, m):
    return (x + m - 1) // m * m


# ---------------------------------------------------------------------------
# Tiled Pallas GEMM:  out = W (Cout_p, CK_p) @ cols (CK_p, N_p) + bias
# ---------------------------------------------------------------------------
def _matmul_bias_kernel(w_ref, col_ref, b_ref, o_ref):
    # Output block index_map ignores k -> block stays resident across the
    # reduction; accumulate straight into it (no scratch), bias in the init.
    @pl.when(pl.program_id(2) == 0)
    def _():
        o_ref[...] = jnp.broadcast_to(b_ref[...], o_ref.shape).astype(o_ref.dtype)

    o_ref[...] += jnp.dot(w_ref[...], col_ref[...],
                          preferred_element_type=jnp.float32)


def pallas_conv_gemm(w_flat, cols, bias, *, tn):
    """w_flat: (Cout, CK) f32, cols: (CK, N_p) bf16 with N_p % tn == 0,
    bias: (Cout,) f32  ->  (Cout_p, N_p) f32 (rows >= Cout are padding)."""
    CK, N_p = cols.shape
    Cout = w_flat.shape[0]
    assert N_p % tn == 0
    TN = tn

    # TM prefers covering all of Cout so cols (the big operand) streams once.
    TM = min(512, _round_up(Cout, 8))
    Cout_p = _round_up(Cout, TM)

    # TK: take the whole reduction in a single k-step when it fits comfortably
    # in VMEM (no CK padding, no k-loop); else fall back to 1024-wide k-steps.
    if CK <= 2048:
        TK, CK_p = CK, CK
        cols_p = cols
    else:
        TK = 1024
        CK_p = _round_up(CK, TK)
        # TODO(synk): build cols pre-padded on CK inside deform_im2col to avoid
        # this extra HBM pass (only reached for very large Cin * K).
        cols_p = jnp.pad(cols, ((0, CK_p - CK), (0, 0)))

    w_p = jnp.pad(w_flat.astype(jnp.bfloat16),
                  ((0, Cout_p - Cout), (0, CK_p - CK)))
    bias_p = jnp.pad(bias.astype(jnp.float32),
                     (0, Cout_p - Cout)).reshape(Cout_p, 1)

    grid = (Cout_p // TM, N_p // TN, CK_p // TK)
    gm, gn, _ = grid

    flops = 2 * Cout_p * CK_p * N_p
    bytes_accessed = (gn * Cout_p * CK_p * 2      # weights (bf16), re-read per j
                      + gm * CK_p * N_p * 2       # cols (bf16), re-read per i
                      + Cout_p * N_p * 4          # output (f32)
                      + Cout_p * 4)               # bias

    return pl.pallas_call(
        _matmul_bias_kernel,
        out_shape=jax.ShapeDtypeStruct((Cout_p, N_p), jnp.float32),
        grid=grid,
        in_specs=[
            pl.BlockSpec((TM, TK), lambda i, j, k: (i, k)),
            pl.BlockSpec((TK, TN), lambda i, j, k: (k, j)),
            pl.BlockSpec((TM, 1), lambda i, j, k: (i, 0)),
        ],
        out_specs=pl.BlockSpec((TM, TN), lambda i, j, k: (i, j)),
        compiler_params=pltpu.CompilerParams(
            dimension_semantics=("parallel", "parallel", "arbitrary"),
            vmem_limit_bytes=32 * 1024 * 1024),
        cost_estimate=pl.CostEstimate(flops=flops, transcendentals=0,
                                      bytes_accessed=bytes_accessed),
    )(w_p, cols_p, bias_p)


# ---------------------------------------------------------------------------
# Deformable im2col: trilinear sampling at (base + offset) coordinates.
# Unrolled 8-corner loop: per corner one bf16 gather + FMA into a single f32
# accumulator; output emitted directly in bf16 GEMM layout, pixel-padded.
# ---------------------------------------------------------------------------
def deform_im2col(x, offset, kernel_size, stride, padding, dilation,
                  deformable_groups, p_pad, out_dtype=jnp.bfloat16):
    """Returns cols of shape (Cin*K, B*p_pad) in `out_dtype` (GEMM layout:
    row = cin*K + k, col = b*p_pad + p); columns with p >= To*Ho*Wo are padding
    (defined but unused values, cropped by the caller)."""
    B, Cin, T, H, W = x.shape
    kT, kH, kW = kernel_size
    sT, sH, sW = stride
    pT, pH, pW = padding
    dT, dH, dW = dilation
    K = kT * kH * kW
    To = (T + 2 * pT - dT * (kT - 1) - 1) // sT + 1
    Ho = (H + 2 * pH - dH * (kH - 1) - 1) // sH + 1
    Wo = (W + 2 * pW - dW * (kW - 1) - 1) // sW + 1
    P = To * Ho * Wo
    dg = deformable_groups
    Cg = Cin // dg
    assert p_pad >= P

    # kernel-tap enumeration (matches weight (Cin, kT, kH, kW) flattening)
    kt, kh, kw = jnp.meshgrid(jnp.arange(kT), jnp.arange(kH), jnp.arange(kW),
                              indexing="ij")
    kt, kh, kw = kt.reshape(K), kh.reshape(K), kw.reshape(K)

    # output-pixel enumeration, padded to p_pad (padding pixels clamp to the
    # last real pixel; their columns are cropped by the caller)
    p_idx = jnp.minimum(jnp.arange(p_pad), P - 1)
    to = p_idx // (Ho * Wo)
    ho = (p_idx // Wo) % Ho
    wo = p_idx % Wo

    base_t = kt[:, None] * dT + (to[None, :] * sT - pT)       # (K, Pp) int32
    base_h = kh[:, None] * dH + (ho[None, :] * sH - pH)
    base_w = kw[:, None] * dW + (wo[None, :] * sW - pW)

    # offsets: (B, 3*dg*K, To, Ho, Wo) -> (B, dg, K, 3, Pp)
    off = offset.reshape(B, dg, K, 3, P).astype(jnp.float32)
    off = jnp.pad(off, ((0, 0),) * 4 + ((0, p_pad - P),))

    t = base_t[None, None].astype(jnp.float32) + off[:, :, :, 0]   # (B,dg,K,Pp)
    h = base_h[None, None].astype(jnp.float32) + off[:, :, :, 1]
    w = base_w[None, None].astype(jnp.float32) + off[:, :, :, 2]

    t0f, h0f, w0f = jnp.floor(t), jnp.floor(h), jnp.floor(w)
    ft, fh, fw = t - t0f, h - h0f, w - w0f
    t0 = t0f.astype(jnp.int32)
    h0 = h0f.astype(jnp.int32)
    w0 = w0f.astype(jnp.int32)

    # gather source: bf16 x, laid out (dg, Cg, 1, B, T*H*W) so the gather result
    # lands directly in GEMM row/column order (dg, Cg, K, B, Pp)
    x_g = (x.astype(jnp.bfloat16)
             .reshape(B, dg, Cg, T * H * W)
             .transpose(1, 2, 0, 3)
             .reshape(dg, Cg, 1, B, T * H * W))

    cols = jnp.zeros((dg, Cg, K, B, p_pad), jnp.float32)
    for at in (0, 1):
        for ah in (0, 1):
            for aw in (0, 1):
                tc, hc, wc = t0 + at, h0 + ah, w0 + aw
                wgt = ((ft if at else 1.0 - ft)
                       * (fh if ah else 1.0 - fh)
                       * (fw if aw else 1.0 - fw))
                valid = ((tc >= 0) & (tc < T) & (hc >= 0) & (hc < H)
                         & (wc >= 0) & (wc < W))
                wgt = wgt * valid.astype(jnp.float32)            # (B,dg,K,Pp)
                idx = (jnp.clip(tc, 0, T - 1) * (H * W)
                       + jnp.clip(hc, 0, H - 1) * W
                       + jnp.clip(wc, 0, W - 1))                 # (B,dg,K,Pp)
                idx_g = idx.transpose(1, 2, 0, 3).reshape(dg, 1, K, B, p_pad)
                wgt_g = wgt.transpose(1, 2, 0, 3)[:, None]       # (dg,1,K,B,Pp)
                g = jnp.take_along_axis(x_g, idx_g, axis=4)      # (dg,Cg,K,B,Pp)
                cols = cols + g.astype(jnp.float32) * wgt_g

    return cols.reshape(Cin * K, B * p_pad).astype(out_dtype), (To, Ho, Wo)


# ---------------------------------------------------------------------------
# DeformConvPack_d equivalent (forward pass)
# ---------------------------------------------------------------------------
class DeformConvPack3D:
    def __init__(self, in_channels, out_channels, kernel_size, stride, padding,
                 dimension="HW", dilation=1, groups=1, deformable_groups=1,
                 bias=True, key=None):
        if groups != 1:
            # TODO(synk): grouped (groups > 1) deformable conv not implemented.
            raise NotImplementedError("groups > 1 not supported")
        t3 = lambda v: (v, v, v) if isinstance(v, int) else tuple(v)
        self.in_channels = in_channels
        self.out_channels = out_channels
        self.kernel_size = t3(kernel_size)
        self.stride = t3(stride)
        self.padding = t3(padding)
        self.dilation = t3(dilation)
        self.dimension = dimension
        self.length = len(dimension)
        self.deformable_groups = deformable_groups
        self.use_bias = bias

        kT, kH, kW = self.kernel_size
        K = kT * kH * kW
        fan_in = (in_channels // groups) * K
        bound = 1.0 / math.sqrt(fan_in)        # kaiming_uniform(a=sqrt(5)) bound
        k1, k2 = jax.random.split(key)
        self.weight = jax.random.uniform(
            k1, (out_channels, in_channels // groups, kT, kH, kW),
            minval=-bound, maxval=bound, dtype=jnp.float32)
        self.bias = jax.random.uniform(
            k2, (out_channels,), minval=-bound, maxval=bound, dtype=jnp.float32)

        # conv_offset: zero weight / zero bias (init_offset())
        off_ch = deformable_groups * self.length * K
        self.conv_offset_weight = jnp.zeros(
            (off_ch, in_channels, kT, kH, kW), jnp.float32)
        self.conv_offset_bias = jnp.zeros((off_ch,), jnp.float32)

    def __call__(self, x):
        B, Cin, T, H, W = x.shape
        kT, kH, kW = self.kernel_size
        sT, sH, sW = self.stride
        pT, pH, pW = self.padding
        dT, dH, dW = self.dilation
        K = kT * kH * kW
        dg = self.deformable_groups

        To = (T + 2 * pT - dT * (kT - 1) - 1) // sT + 1
        Ho = (H + 2 * pH - dH * (kH - 1) - 1) // sH + 1
        Wo = (W + 2 * pW - dW * (kW - 1) - 1) // sW + 1
        P = To * Ho * Wo

        # ---- conv_offset: zero-init Conv3d via native XLA conv.
        # TODO(synk): the reference nn.Conv3d uses dilation=1; for module
        # dilation != 1 its spatial output can mismatch (To,Ho,Wo) (the PyTorch
        # reference shares this issue).
        temp = lax.conv_general_dilated(
            x, self.conv_offset_weight,
            window_strides=self.stride,
            padding=[(p, p) for p in self.padding],
            dimension_numbers=("NCDHW", "OIDHW", "NCDHW"),
        ) + self.conv_offset_bias[None, :, None, None, None]

        # ---- rearrange temp into (dt, dh, dw) triples exactly as torch forward
        dim_T = "T" in self.dimension
        dim_H = "H" in self.dimension
        if self.length == 2:
            a = temp[:, 0::2]              # temp[:, 2i]
            b = temp[:, 1::2]              # temp[:, 2i+1]
            z = jnp.zeros_like(a)
            if not dim_T:
                off_t, off_h, off_w = z, a, b
            elif not dim_H:
                off_t, off_h, off_w = a, z, b
            else:                          # not dim_W
                off_t, off_h, off_w = a, b, z
            offset = jnp.stack([off_t, off_h, off_w], axis=2)
            offset = offset.reshape(B, 3 * dg * K, To, Ho, Wo)
        elif self.length == 1:
            z = jnp.zeros_like(temp)
            if dim_T:
                off_t, off_h, off_w = temp, z, z
            elif dim_H:
                off_t, off_h, off_w = z, temp, z
            else:
                off_t, off_h, off_w = z, z, temp
            offset = jnp.stack([off_t, off_h, off_w], axis=2)
            offset = offset.reshape(B, 3 * dg * K, To, Ho, Wo)
        else:
            # TODO(synk): length==3 ('THW') leaves `offset` undefined in the
            # PyTorch reference forward; use temp directly (assumes (dg, K, 3)
            # channel order).
            offset = temp

        # ---- deformable im2col -> bf16 cols in padded GEMM layout
        TN = min(512, _round_up(P, 128))
        P_p = _round_up(P, TN)
        cols, _ = deform_im2col(x, offset, self.kernel_size, self.stride,
                                self.padding, self.dilation, dg, P_p)

        # ---- hot path: tiled Pallas MXU GEMM with bias
        w_flat = self.weight.reshape(self.out_channels, Cin * K)
        out2d = pallas_conv_gemm(w_flat, cols, self.bias, tn=TN)

        out = out2d[:self.out_channels].reshape(self.out_channels, B, P_p)
        out = out[:, :, :P].transpose(1, 0, 2)
        return out.reshape(B, self.out_channels, To, Ho, Wo)


if __name__ == "__main__":
    key = jax.random.PRNGKey(0)
    kx, kp1, kp2 = jax.random.split(key, 3)

    B, Cin, Cout, T, H, W = 2, 4, 8, 4, 8, 8
    x = jax.random.normal(kx, (B, Cin, T, H, W), dtype=jnp.float32)
    x_b = x.astype(jnp.bfloat16).astype(jnp.float32)   # bf16-rounded reference input

    # ---- Test 1: zero offsets (conv_offset zero-init) == plain 3-D conv -----
    mod = DeformConvPack3D(Cin, Cout, kernel_size=3, stride=1, padding=1,
                           dimension="HW", dilation=1, groups=1,
                           deformable_groups=1, bias=True, key=kp1)
    out = jax.block_until_ready(jax.jit(mod.__call__)(x))
    w_b = mod.weight.astype(jnp.bfloat16).astype(jnp.float32)
    ref = lax.conv_general_dilated(
        x_b, w_b, window_strides=mod.stride,
        padding=[(p, p) for p in mod.padding],
        rhs_dilation=mod.dilation,
        dimension_numbers=("NCDHW", "OIDHW", "NCDHW"),
    ) + mod.bias[None, :, None, None, None]
    assert out.shape == (B, Cout, T, H, W), out.shape
    err1 = float(jnp.max(jnp.abs(out - ref)))
    assert jnp.allclose(out, ref, atol=2e-2, rtol=2e-2), err1

    # ---- Test 2: nonzero fractional offsets (dh = +0.5), padding = 0 --------
    # With padding=0 and a constant +0.5 offset along H the deformable conv
    # equals 0.5*(conv(x) + conv(x shifted by -1 in H with zero fill)); this
    # exercises the offset channel ordering, trilinear weights and boundary
    # masking that the zero-offset test cannot.
    mod2 = DeformConvPack3D(Cin, Cout, kernel_size=3, stride=1, padding=0,
                            dimension="HW", dilation=1, groups=1,
                            deformable_groups=1, bias=True, key=kp2)
    mod2.conv_offset_bias = mod2.conv_offset_bias.at[0::2].set(0.5)  # dh = 0.5
    out2 = jax.block_until_ready(jax.jit(mod2.__call__)(x))
    w2_b = mod2.weight.astype(jnp.bfloat16).astype(jnp.float32)

    def conv0(inp):
        return lax.conv_general_dilated(
            inp, w2_b, window_strides=(1, 1, 1), padding=[(0, 0)] * 3,
            dimension_numbers=("NCDHW", "OIDHW", "NCDHW"))

    x_shift = jnp.concatenate(
        [x_b[:, :, :, 1:, :], jnp.zeros_like(x_b[:, :, :, :1, :])], axis=3)
    ref2 = 0.5 * (conv0(x_b) + conv0(x_shift)) \
        + mod2.bias[None, :, None, None, None]
    assert out2.shape == ref2.shape, (out2.shape, ref2.shape)
    err2 = float(jnp.max(jnp.abs(out2 - ref2)))
    assert jnp.allclose(out2, ref2, atol=2e-2, rtol=2e-2), err2

    print("KERNEL_OK")
</pallas_src>

<mosaic_0001>
module attributes {stable_mosaic.version = 11 : i64} {
  func.func @_matmul_bias_kernel(%arg0: i32, %arg1: i32, %arg2: i32, %arg3: memref<8x108xbf16, #tpu.memory_space<vmem>>, %arg4: memref<108x256xbf16, #tpu.memory_space<vmem>>, %arg5: memref<8x1xf32, #tpu.memory_space<vmem>>, %arg6: memref<8x256xf32, #tpu.memory_space<vmem>>) attributes {dimension_semantics = [#tpu.dimension_semantics<parallel>, #tpu.dimension_semantics<parallel>, #tpu.dimension_semantics<arbitrary>], iteration_bounds = array<i64: 1, 2, 1>, scalar_prefetch = 0 : i64, scratch_operands = 0 : i64, tpu.core_type = #tpu.core_type<tc>, window_params = [{transform_indices = @transform_0, window_bounds = array<i64: 8, 108>}, {transform_indices = @transform_1, window_bounds = array<i64: 108, 256>}, {transform_indices = @transform_2, window_bounds = array<i64: 8, 1>}, {transform_indices = @transform_3, window_bounds = array<i64: 8, 256>}]} {
    %c0_i32 = arith.constant 0 : i32
    %0 = arith.cmpi eq, %arg2, %c0_i32 : i32
    %1 = arith.extui %0 : i1 to i32
    %c0_i32_0 = arith.constant 0 : i32
    %2 = arith.cmpi ne, %1, %c0_i32_0 : i32
    scf.if %2 {
      %c0_8 = arith.constant 0 : index
      %c0_9 = arith.constant 0 : index
      %9 = vector.load %arg5[%c0_8, %c0_9] : memref<8x1xf32, #tpu.memory_space<vmem>>, vector<8x1xf32>
      %10 = vector.shape_cast %9 : vector<8x1xf32> to vector<8x1xf32>
      %11 = vector.broadcast %10 : vector<8x1xf32> to vector<8x256xf32>
      %c0_10 = arith.constant 0 : index
      %c0_11 = arith.constant 0 : index
      %12 = vector.load %arg6[%c0_10, %c0_11] : memref<8x256xf32, #tpu.memory_space<vmem>>, vector<8x256xf32>
      tpu.vector_store %arg6[%c0_10, %c0_11], %11 {strides = array<i32>} : memref<8x256xf32, #tpu.memory_space<vmem>>, vector<8x256xf32>,
    } else {
    }
    %c0 = arith.constant 0 : index
    %c0_1 = arith.constant 0 : index
    %3 = vector.load %arg6[%c0, %c0_1] : memref<8x256xf32, #tpu.memory_space<vmem>>, vector<8x256xf32>
    %c0_2 = arith.constant 0 : index
    %c0_3 = arith.constant 0 : index
    %4 = vector.load %arg3[%c0_2, %c0_3] : memref<8x108xbf16, #tpu.memory_space<vmem>>, vector<8x108xbf16>
    %c0_4 = arith.constant 0 : index
    %c0_5 = arith.constant 0 : index
    %5 = vector.load %arg4[%c0_4, %c0_5] : memref<108x256xbf16, #tpu.memory_space<vmem>>, vector<108x256xbf16>
    %cst = arith.constant dense<0.000000e+00> : vector<8x256xf32>
    %6 = tpu.matmul %4, %5, %cst {dimension_numbers = #tpu.dot_dimension_numbers<[1], [0], [0], [1], [0, 0, 1, 1], [], []>} : vector<8x108xbf16>, vector<108x256xbf16>, vector<8x256xf32> -> vector<8x256xf32>
    %7 = arith.addf %3, %6 : vector<8x256xf32>
    %c0_6 = arith.constant 0 : index
    %c0_7 = arith.constant 0 : index
    %8 = vector.load %arg6[%c0_6, %c0_7] : memref<8x256xf32, #tpu.memory_space<vmem>>, vector<8x256xf32>
    tpu.vector_store %arg6[%c0_6, %c0_7], %7 {strides = array<i32>} : memref<8x256xf32, #tpu.memory_space<vmem>>, vector<8x256xf32>,
    return
  }
  func.func @transform_0(%arg0: i32, %arg1: i32, %arg2: i32) -> (i32, i32) {
    %c0_i32 = arith.constant 0 : i32
    return %arg0, %arg2 : i32, i32
  }
  func.func @transform_1(%arg0: i32, %arg1: i32, %arg2: i32) -> (i32, i32) {
    %c0_i32 = arith.constant 0 : i32
    return %arg2, %arg1 : i32, i32
  }
  func.func @transform_2(%arg0: i32, %arg1: i32, %arg2: i32) -> (i32, i32) {
    %c0_i32 = arith.constant 0 : i32
    %c0_i32_0 = arith.constant 0 : i32
    return %arg0, %c0_i32 : i32, i32
  }
  func.func @transform_3(%arg0: i32, %arg1: i32, %arg2: i32) -> (i32, i32) {
    %c0_i32 = arith.constant 0 : i32
    return %arg0, %arg1 : i32, i32
  }
}

</mosaic_0001>

<llo_original>
// kernel: a_call__.1
$region0: #{a_call__.1}
  #allocation0 [shape = 'u32[]', space=smem, size = 0x4, offset = 0x4, fixed_abs, tag = 'smem constant byte address 0x4 - core index']
  #allocation1 [shape = 'u32[144,128]{1,0:T(1,128)}', space=vmem, size = 0x12000, scoped, tag = 'internal scratch']
  %s0 = inlined_call_operand.vmem [shape: bf16[8,108], index: 0, kind: input, shape index: {}]
  %s1 = inlined_call_operand.vmem [shape: bf16[108,512], index: 1, kind: input, shape index: {}]
  %s2 = inlined_call_operand.vmem [shape: f32[8,1], index: 2, kind: input, shape index: {}]
  %s3 = inlined_call_operand.vmem [shape: f32[8,512], index: 3, kind: output, shape index: {}]
  %s4 = sld [smem:[#allocation0]]
  $region87: #{a_call__.1} parent=0
    _
  %s6 = ssub.s32 1, %s4
  %s7 = scalar_select 0, %s6, %s4
  $region1: #{a_call__.1} parent=0
    #allocation2 [shape = 'u8[114688]{0}', space=vmem, size = 0x1c000, scoped, tag = 'input window, operand 1']
    loop: start=0, step=1, limit=4
    $region2: #{a_call__.1} parent=1 // loop_pre_header
      _
    $region3: #{a_call__.1} parent=1 // loop_header
      %s9 = sphi 0, %s13
      %p10 = scmp.ge.s32.totalorder %s9, 4
      %s16 = sphi 0, %s35
      %s17 = sphi 0, %s31
      %s18 = sphi 0, %s27
      %s19 = sphi 0, %s16
      %s20 = sphi 0, %s17
      %s21 = sphi 0, %s18
      %s22 = sphi 0, %s19
      %s23 = sphi 0, %s20
      %s24 = sphi 0, %s21
      %s40 = sphi 0, %s42
      %s43 = sphi 0, %s40
      %s44 = sphi 0, %s43
      %s60 = sphi 0, %s44
      %s68 = sphi 0, %s70
      %s71 = sphi 0, %s68
      %s72 = sphi 0, %s71
      %s88 = sphi 0, %s72
      %s94 = sphi 0, %s96
      %s97 = sphi 0, %s94
      %s98 = sphi 0, %s97
      %s114 = sphi 0, %s98
      %s122 = sphi 0, %s124
      %s125 = sphi 0, %s122
      %s126 = sphi 0, %s125
      %s142 = sphi 0, %s126
    $region4: #{a_call__.1} parent=1 // loop_header_branch
      %12 = sbr.rel (%p10) target = $region8
    $region5: #{a_call__.1} parent=1 // loop_body
      %s14 = ssub.s32 %s9, 1
      %s15 = ssub.s32 %s9, 2
      %s25 = sadd.s32 1, %s18
      %p26 = scmp.ge.s32.totalorder %s25, 1
      %s27 = scalar_select %p26, 0, %s25
      %s28 = sadd.s32 1, %s17
      %s29 = scalar_select %p26, %s28, %s17
      %p30 = scmp.ge.s32.totalorder %s29, 2
      %s31 = scalar_select %p30, 0, %s29
      %s32 = sadd.s32 1, %s16
      %s33 = scalar_select %p30, %s32, %s16
      %p34 = scmp.ge.s32.totalorder %s33, 1
      %s35 = scalar_select %p34, 0, %s33
      %s36 = ssub.s32 %s16, %s35
      %s37 = ssub.s32 %s18, %s27
      %s38 = sor.u32 %s36, %s37
      %p39 = scmp.eq.s32.totalorder %s38, 0
      %s41 = sadd.s32 %s40, 1
      %s42 = scalar_select %p39, %s40, %s41
      %p45 = pneg %p39
      %p46 = scmp.eq.s32.totalorder %s9, 1
      %p47 = por %p45, %p46
      %p48 = scmp.ne.s32.totalorder %s40, %s43
      %p49 = scmp.eq.s32.totalorder %s9, 0
      %p50 = por %p48, %p49
      %p51 = scmp.ne.s32.totalorder %s40, %s43
      %p52 = scmp.eq.s32.totalorder %s14, 1
      %p53 = por %p51, %p52
      %p54 = scmp.ne.s32.totalorder %s43, %s44
      %p55 = scmp.eq.s32.totalorder %s14, 0
      %p56 = por %p54, %p55
      %p57 = scmp.ne.s32.totalorder %s43, %s44
      %p58 = scmp.eq.s32.totalorder %s15, 1
      %p59 = por %p57, %p58
      %p61 = scmp.ne.s32.totalorder %s44, %s60
      %p62 = scmp.eq.s32.totalorder %s15, 0
      %p63 = por %p61, %p62
      %s64 = ssub.s32 %s18, %s27
      %s65 = ssub.s32 %s17, %s31
      %s66 = sor.u32 %s64, %s65
      %p67 = scmp.eq.s32.totalorder %s66, 0
      %s69 = sadd.s32 %s68, 1
      %s70 = scalar_select %p67, %s68, %s69
      %p73 = pneg %p67
      %p74 = scmp.eq.s32.totalorder %s9, 1
      %p75 = por %p73, %p74
      %p76 = scmp.ne.s32.totalorder %s68, %s71
      %p77 = scmp.eq.s32.totalorder %s9, 0
      %p78 = por %p76, %p77
      %p79 = scmp.ne.s32.totalorder %s68, %s71
      %p80 = scmp.eq.s32.totalorder %s14, 1
      %p81 = por %p79, %p80
      %p82 = scmp.ne.s32.totalorder %s71, %s72
      %p83 = scmp.eq.s32.totalorder %s14, 0
      %p84 = por %p82, %p83
      %p85 = scmp.ne.s32.totalorder %s71, %s72
      %p86 = scmp.eq.s32.totalorder %s15, 1
      %p87 = por %p85, %p86
      %p89 = scmp.ne.s32.totalorder %s72, %s88
      %p90 = scmp.eq.s32.totalorder %s15, 0
      %p91 = por %p89, %p90
      %s92 = ssub.s32 %s16, %s35
      %p93 = scmp.eq.s32.totalorder %s92, 0
      %s95 = sadd.s32 %s94, 1
      %s96 = scalar_select %p93, %s94, %s95
      %p99 = pneg %p93
      %p100 = scmp.eq.s32.totalorder %s9, 1
      %p101 = por %p99, %p100
      %p102 = scmp.ne.s32.totalorder %s94, %s97
      %p103 = scmp.eq.s32.totalorder %s9, 0
      %p104 = por %p102, %p103
      %p105 = scmp.ne.s32.totalorder %s94, %s97
      %p106 = scmp.eq.s32.totalorder %s14, 1
      %p107 = por %p105, %p106
      %p108 = scmp.ne.s32.totalorder %s97, %s98
      %p109 = scmp.eq.s32.totalorder %s14, 0
      %p110 = por %p108, %p109
      %p111 = scmp.ne.s32.totalorder %s97, %s98
      %p112 = scmp.eq.s32.totalorder %s15, 1
      %p113 = por %p111, %p112
      %p115 = scmp.ne.s32.totalorder %s98, %s114
      %p116 = scmp.eq.s32.totalorder %s15, 0
      %p117 = por %p115, %p116
      %s118 = ssub.s32 %s16, %s35
      %s119 = ssub.s32 %s17, %s31
      %s120 = sor.u32 %s118, %s119
      %p121 = scmp.eq.s32.totalorder %s120, 0
      %s123 = sadd.s32 %s122, 1
      %s124 = scalar_select %p121, %s122, %s123
      %p127 = pneg %p121
      %p128 = scmp.eq.s32.totalorder %s9, 1
      %p129 = por %p127, %p128
      %p130 = scmp.ne.s32.totalorder %s122, %s125
      %p131 = scmp.eq.s32.totalorder %s9, 0
      %p132 = por %p130, %p131
      %p133 = scmp.ne.s32.totalorder %s122, %s125
      %p134 = scmp.eq.s32.totalorder %s14, 1
      %p135 = por %p133, %p134
      %p136 = scmp.ne.s32.totalorder %s125, %s126
      %p137 = scmp.eq.s32.totalorder %s14, 0
      %p138 = por %p136, %p137
      %p139 = scmp.ne.s32.totalorder %s125, %s126
      %p140 = scmp.eq.s32.totalorder %s15, 1
      %p141 = por %p139, %p140
      %p143 = scmp.ne.s32.totalorder %s126, %s142
      %p144 = scmp.eq.s32.totalorder %s15, 0
      %p145 = por %p143, %p144
      %p146 = scmp.le.s32.totalorder 1, %s9
      %p147 = scmp.lt.s32.totalorder %s9, 3
      %p148 = pnand %p146, %p147
      %p149 = pneg %p148
      // Predicated region
      $region9: #{a_call__.1} parent=5 // pred_check
        _
      $region10: #{a_call__.1} parent=5 // pred_check_branch
        %151 = sbr.rel (%p148) target = $region12
      $region11: #{a_call__.1} parent=5 // pred_region
        %s152 = ssub.s32 %s9, 1
        // Predicated region
        $region13: #{a_call__.1} parent=11 // pred_check
          %p153 = pneg %p56
        $region14: #{a_call__.1} parent=11 // pred_check_branch
          %155 = sbr.rel (%p153) target = $region16
        $region15: #{a_call__.1} parent=11 // pred_region
          %p156 = scmp.lt.s32.totalorder %s19, 0
          %s157 = scalar_select %p156, %s19, 0
          %p158 = scmp.lt.s32.totalorder %s21, 0
          %s159 = scalar_select %p158, %s21, 0
          %s160 = sadd.s32 %s159, %s157
          %s161 = smul.addr %s160, 4
          %s162 = scalar_lea.vmem %s0, %s161
        $region16: #{a_call__.1} parent=11 // pred_fallthru
          _
        // Predicated region
        $region17: #{a_call__.1} parent=11 // pred_check
          %p163 = pneg %p110
        $region18: #{a_call__.1} parent=11 // pred_check_branch
          %165 = sbr.rel (%p163) target = $region20
        $region19: #{a_call__.1} parent=11 // pred_region
          %p166 = scmp.lt.s32.totalorder %s19, 0
          %s167 = scalar_select %p166, %s19, 0
          %s168 = smul.addr %s167, 8
          %s169 = scalar_lea.vmem %s2, %s168
        $region20: #{a_call__.1} parent=11 // pred_fallthru
          _
      $region12: #{a_call__.1} parent=5 // pred_fallthru
        _
      %p170 = scmp.lt.s32.totalorder %s9, 2
      // Predicated region
      $region21: #{a_call__.1} parent=5 // pred_check
        %p171 = pneg %p170
      $region22: #{a_call__.1} parent=5 // pred_check_branch
        %173 = sbr.rel (%p171) target = $region24
      $region23: #{a_call__.1} parent=5 // pred_region
        // Predicated region
        $region25: #{a_call__.1} parent=23 // pred_check
          %p174 = pneg %p78
        $region26: #{a_call__.1} parent=23 // pred_check_branch
          %176 = sbr.rel (%p174) target = $region28
        $region27: #{a_call__.1} parent=23 // pred_region
          %s177 = sand.u32 %s68, 1
          %s178 = sand.u32 %s68, 1
          %s179 = smul.addr %s178, 112
          %s180 = scalar_lea.vmem [#allocation2], %s179
          %s181 = smul.u32 14, %s18
          %s182 = smul.u32 2, %s17
          %s183 = smul.addr %s181, 4
          %s184 = sadd.s32 %s182, %s183
          %s185 = smul.addr %s184, 4
          %s186 = scalar_lea.vmem %s1, %s185
          // Predicated region
          $region29: #{a_call__.1} parent=27 // pred_check
            _
          $region30: #{a_call__.1} parent=27 // pred_check_branch
            %188 = sbr.rel (0) target = $region32
          $region31: #{a_call__.1} parent=27 // pred_region
            // Predicated region
            $region33: #{a_call__.1} parent=31 // pred_check
              _
            $region34: #{a_call__.1} parent=31 // pred_check_branch
              %190 = sbr.rel (0) target = $region36
            $region35: #{a_call__.1} parent=31 // pred_region
              // Predicated region
              $region48: #{a_call__.1} parent=35 // pred_check
                _
              $region49: #{a_call__.1} parent=35 // pred_check_branch
                %231 = sbr.rel (0) target = $region51
              $region50: #{a_call__.1} parent=35 // pred_region
                loop: start=0, step=1, limit=1
                $region52: #{a_call__.1} parent=50 // loop_pre_header
                  _
                $region53: #{a_call__.1} parent=50 // loop_header
                  %s233 = sphi 0, %s237
                  %p234 = scmp.ge.s32.totalorder %s233, 1
                  %s238 = sphi %s186, %s186
                  %s239 = sphi %s180, %s180
                $region54: #{a_call__.1} parent=50 // loop_header_branch
                  %236 = sbr.rel (%p234) target = $region58
                $region55: #{a_call__.1} parent=50 // loop_body
                  %v240 = vld [vmem:[%s238] sm:$0xff]
                  %241 = vst [vmem:[%s239] sm:$0xff] %v240
                  %v242 = vld [vmem:[%s238 + $0x10] sm:$0xff]
                  %243 = vst [vmem:[%s239 + $0x8] sm:$0xff] %v242
                  %v244 = vld [vmem:[%s238 + $0x20] sm:$0xff]
                  %245 = vst [vmem:[%s239 + $0x10] sm:$0xff] %v244
                  %v246 = vld [vmem:[%s238 + $0x30] sm:$0xff]
                  %247 = vst [vmem:[%s239 + $0x18] sm:$0xff] %v246
                  %v248 = vld [vmem:[%s238 + $0x40] sm:$0xff]
                  %249 = vst [vmem:[%s239 + $0x20] sm:$0xff] %v248
                  %v250 = vld [vmem:[%s238 + $0x50] sm:$0xff]
                  %251 = vst [vmem:[%s239 + $0x28] sm:$0xff] %v250
                  %v252 = vld [vmem:[%s238 + $0x60] sm:$0xff]
                  %253 = vst [vmem:[%s239 + $0x30] sm:$0xff] %v252
                  %v254 = vld [vmem:[%s238 + $0x70] sm:$0xff]
                  %255 = vst [vmem:[%s239 + $0x38] sm:$0xff] %v254
                  %v256 = vld [vmem:[%s238 + $0x80] sm:$0xff]
                  %257 = vst [vmem:[%s239 + $0x40] sm:$0xff] %v256
                  %v258 = vld [vmem:[%s238 + $0x90] sm:$0xff]
                  %259 = vst [vmem:[%s239 + $0x48] sm:$0xff] %v258
                  %v260 = vld [vmem:[%s238 + $0xa0] sm:$0xff]
                  %261 = vst [vmem:[%s239 + $0x50] sm:$0xff] %v260
                  %v262 = vld [vmem:[%s238 + $0xb0] sm:$0xff]
                  %263 = vst [vmem:[%s239 + $0x58] sm:$0xff] %v262
                  %v264 = vld [vmem:[%s238 + $0xc0] sm:$0xff]
                  %265 = vst [vmem:[%s239 + $0x60] sm:$0xff] %v264
                  %v266 = vld [vmem:[%s238 + $0xd0] sm:$0xff]
                  %267 = vst [vmem:[%s239 + $0x68] sm:$0xff] %v266
                $region56: #{a_call__.1} parent=50 // loop_footer
                  %s237 = sadd.s32 1, %s233
                $region57: #{a_call__.1} parent=50 // loop_footer_branch
                  %232 = sbr.rel target = $region53
                $region58: #{a_call__.1} parent=50 // loop_exit
                  _
              $region51: #{a_call__.1} parent=35 // pred_fallthru
                _
              // Predicated region
              $region59: #{a_call__.1} parent=35 // pred_check
                _
              $region60: #{a_call__.1} parent=35 // pred_check_branch
                %269 = sbr.rel target = $region62
              $region61: #{a_call__.1} parent=35 // pred_region
                _
              $region62: #{a_call__.1} parent=35 // pred_fallthru
                _
            $region36: #{a_call__.1} parent=31 // pred_fallthru
              _
            // Predicated region
            $region37: #{a_call__.1} parent=31 // pred_check
              _
            $region38: #{a_call__.1} parent=31 // pred_check_branch
              %192 = sbr.rel target = $region40
            $region39: #{a_call__.1} parent=31 // pred_region
              loop: start=0, step=1, limit=1
              $region41: #{a_call__.1} parent=39 // loop_pre_header
                _
              $region42: #{a_call__.1} parent=39 // loop_header
                %s195 = sphi 0, %s199
                %p196 = scmp.ge.s32.totalorder %s195, 1
                %s200 = sphi %s186, %s186
                %s201 = sphi %s180, %s180
              $region43: #{a_call__.1} parent=39 // loop_header_branch
                %198 = sbr.rel (%p196) target = $region47
              $region44: #{a_call__.1} parent=39 // loop_body
                %v202 = vld [vmem:[%s200] sm:$0xff]
                %203 = vst [vmem:[%s201] sm:$0xff] %v202
                %v204 = vld [vmem:[%s200 + $0x10] sm:$0xff]
                %205 = vst [vmem:[%s201 + $0x8] sm:$0xff] %v204
                %v206 = vld [vmem:[%s200 + $0x20] sm:$0xff]
                %207 = vst [vmem:[%s201 + $0x10] sm:$0xff] %v206
                %v208 = vld [vmem:[%s200 + $0x30] sm:$0xff]
                %209 = vst [vmem:[%s201 + $0x18] sm:$0xff] %v208
                %v210 = vld [vmem:[%s200 + $0x40] sm:$0xff]
                %211 = vst [vmem:[%s201 + $0x20] sm:$0xff] %v210
                %v212 = vld [vmem:[%s200 + $0x50] sm:$0xff]
                %213 = vst [vmem:[%s201 + $0x28] sm:$0xff] %v212
                %v214 = vld [vmem:[%s200 + $0x60] sm:$0xff]
                %215 = vst [vmem:[%s201 + $0x30] sm:$0xff] %v214
                %v216 = vld [vmem:[%s200 + $0x70] sm:$0xff]
                %217 = vst [vmem:[%s201 + $0x38] sm:$0xff] %v216
                %v218 = vld [vmem:[%s200 + $0x80] sm:$0xff]
                %219 = vst [vmem:[%s201 + $0x40] sm:$0xff] %v218
                %v220 = vld [vmem:[%s200 + $0x90] sm:$0xff]
                %221 = vst [vmem:[%s201 + $0x48] sm:$0xff] %v220
                %v222 = vld [vmem:[%s200 + $0xa0] sm:$0xff]
                %223 = vst [vmem:[%s201 + $0x50] sm:$0xff] %v222
                %v224 = vld [vmem:[%s200 + $0xb0] sm:$0xff]
                %225 = vst [vmem:[%s201 + $0x58] sm:$0xff] %v224
                %v226 = vld [vmem:[%s200 + $0xc0] sm:$0xff]
                %227 = vst [vmem:[%s201 + $0x60] sm:$0xff] %v226
                %v228 = vld [vmem:[%s200 + $0xd0] sm:$0xff]
                %229 = vst [vmem:[%s201 + $0x68] sm:$0xff] %v228
              $region45: #{a_call__.1} parent=39 // loop_footer
                %s199 = sadd.s32 1, %s195
              $region46: #{a_call__.1} parent=39 // loop_footer_branch
                %194 = sbr.rel target = $region42
              $region47: #{a_call__.1} parent=39 // loop_exit
                _
            $region40: #{a_call__.1} parent=31 // pred_fallthru
              _
          $region32: #{a_call__.1} parent=27 // pred_fallthru
            _
          %270 = vnop
        $region28: #{a_call__.1} parent=23 // pred_fallthru
          _
      $region24: #{a_call__.1} parent=5 // pred_fallthru
        _
      %p271 = scmp.le.s32.totalorder 1, %s9
      %p272 = scmp.lt.s32.totalorder %s9, 3
      %p273 = pnand %p271, %p272
      %p274 = pneg %p273
      // Predicated region
      $region63: #{a_call__.1} parent=5 // pred_check
        _
      $region64: #{a_call__.1} parent=5 // pred_check_branch
        %276 = sbr.rel (%p273) target = $region66
      $region65: #{a_call__.1} parent=5 // pred_region
        %s277 = ssub.s32 %s9, 1
        %s278 = sand.u32 %s71, 1
        %s279 = sand.u32 %s71, 1
        %s280 = smul.addr %s279, 112
        %s281 = scalar_lea.vmem [#allocation2], %s280
        // Predicated region
        $region67: #{a_call__.1} parent=65 // pred_check
          %p282 = pneg %p84
        $region68: #{a_call__.1} parent=65 // pred_check_branch
          %284 = sbr.rel (%p282) target = $region70
        $region69: #{a_call__.1} parent=65 // pred_region
          _
        $region70: #{a_call__.1} parent=65 // pred_fallthru
          _
        %p285 = scmp.lt.s32.totalorder %s19, 0
        %s286 = scalar_select %p285, %s19, 0
        %p287 = scmp.lt.s32.totalorder %s21, 0
        %s288 = scalar_select %p287, %s21, 0
        %s289 = sadd.s32 %s288, %s286
        %s290 = smul.addr %s289, 4
        %s291 = scalar_lea.vmem %s0, %s290
        %p292 = pneg %p56
        %p293 = pneg %p53
        %s294 = sand.u32 %s71, 1
        %s295 = sand.u32 %s71, 1
        %s296 = smul.addr %s295, 112
        %s297 = scalar_lea.vmem [#allocation2], %s296
        %p298 = pneg %p84
        %p299 = pneg %p81
        %p300 = scmp.lt.s32.totalorder %s19, 0
        %s301 = scalar_select %p300, %s19, 0
        %s302 = smul.addr %s301, 8
        %s303 = scalar_lea.vmem %s2, %s302
        %p304 = pneg %p110
        %p305 = pneg %p107
        %p306 = pneg %p138
        %p307 = pneg %p135
        %s308 = smul.u32 2, %s20
        %p309 = scmp.lt.s32.totalorder %s19, 0
        %s310 = scalar_select %p309, %s19, 0
        %p311 = scmp.lt.s32.totalorder %s308, 3
        %s312 = scalar_select %p311, %s308, 3
        %s313 = smul.addr %s310, 4
        %s314 = sadd.s32 %s312, %s313
        %s315 = smul.addr %s314, 8
        %s316 = scalar_lea.vmem %s3, %s315
        %p317 = scmp.lt.s32.totalorder %s19, 0
        %s318 = scalar_select %p317, %s19, 0
        %p319 = scmp.lt.s32.totalorder %s21, 0
        %s320 = scalar_select %p319, %s21, 0
        %s321 = sadd.s32 %s320, %s318
        %s322 = smul.addr %s321, 4
        %s323 = scalar_lea.vmem %s0, %s322
        %s324 = smul.u32 14, %s21
        %s325 = smul.u32 2, %s20
        %p326 = scmp.lt.s32.totalorder %s19, 0
        %s327 = scalar_select %p326, %s19, 0
        %s328 = smul.addr %s327, 8
        %s329 = scalar_lea.vmem %s2, %s328
        %s330 = smul.u32 2, %s20
        %p331 = scmp.lt.s32.totalorder %s19, 0
        %s332 = scalar_select %p331, %s19, 0
        %p333 = scmp.lt.s32.totalorder %s330, 3
        %s334 = scalar_select %p333, %s330, 3
        %s335 = smul.addr %s332, 4
        %s336 = sadd.s32 %s334, %s335
        %s337 = smul.addr %s336, 8
        %s338 = scalar_lea.vmem %s3, %s337
        %s339 = smul.u32 2, %s20
        %p341 = scmp.eq.s32.totalorder %s21, 0
        // Predicated region
        $region71: #{a_call__.1} parent=65 // pred_check
          %p342 = pneg %p341
        $region72: #{a_call__.1} parent=65 // pred_check_branch
          %344 = sbr.rel (%p342) target = $region74
        $region73: #{a_call__.1} parent=65 // pred_region
          %v345 = vld [vmem:[%s329] sm:$0xff]
          %347 = vset.pattern.permute.xlu0 0
          %348 = vperm.xlu0 %347, %v345
          %v349 = vpop.permute.xlu0 %348
          %351 = vst [vmem:[%s338] sm:$0xff] %v349
          %352 = vst [vmem:[%s338 + $0x8] sm:$0xff] %v349
        $region74: #{a_call__.1} parent=65 // pred_fallthru
          _
        %v353 = vld [vmem:[%s338] sm:$0xff]
        %v354 = vld [vmem:[%s338 + $0x8] sm:$0xff]
        %v355 = vld [vmem:[%s323] sm:$0xf]
        %v356 = vld [vmem:[%s281] sm:$0xff]
        %v357 = vld [vmem:[%s281 + $0x8] sm:$0xff]
        %v358 = vld [vmem:[%s281 + $0x10] sm:$0xff]
        %v359 = vld [vmem:[%s281 + $0x18] sm:$0xff]
        %v360 = vld [vmem:[%s281 + $0x20] sm:$0xff]
        %v361 = vld [vmem:[%s281 + $0x28] sm:$0xff]
        %v362 = vld [vmem:[%s281 + $0x30] sm:$0xff]
        %v363 = vld [vmem:[%s281 + $0x38] sm:$0xff]
        %v364 = vld [vmem:[%s281 + $0x40] sm:$0xff]
        %v365 = vld [vmem:[%s281 + $0x48] sm:$0xff]
        %v366 = vld [vmem:[%s281 + $0x50] sm:$0xff]
        %v367 = vld [vmem:[%s281 + $0x58] sm:$0xff]
        %v368 = vld [vmem:[%s281 + $0x60] sm:$0xff]
        %v369 = vld [vmem:[%s281 + $0x68] sm:$0x33]
        %v384 = vunpack.c.l.b16 %v356
        %v385 = vunpack.c.h.b16 %v356
        %v386 = vunpack.c.l.b16 %v357
        %v387 = vunpack.c.h.b16 %v357
        %v388 = vunpack.c.l.b16 %v358
        %v389 = vunpack.c.h.b16 %v358
        %v390 = vunpack.c.l.b16 %v359
        %v391 = vunpack.c.h.b16 %v359
        %v392 = vunpack.c.l.b16 %v360
        %v393 = vunpack.c.h.b16 %v360
        %v394 = vunpack.c.l.b16 %v361
        %v395 = vunpack.c.h.b16 %v361
        %v396 = vunpack.c.l.b16 %v362
        %v397 = vunpack.c.h.b16 %v362
        %v398 = vunpack.c.l.b16 %v363
        %v399 = vunpack.c.h.b16 %v363
        %v400 = vunpack.c.l.b16 %v364
        %v401 = vunpack.c.h.b16 %v364
        %v402 = vunpack.c.l.b16 %v365
        %v403 = vunpack.c.h.b16 %v365
        %v404 = vunpack.c.l.b16 %v366
        %v405 = vunpack.c.h.b16 %v366
        %v406 = vunpack.c.l.b16 %v367
        %v407 = vunpack.c.h.b16 %v367
        %v408 = vunpack.c.l.b16 %v368
        %v409 = vunpack.c.h.b16 %v368
        %v410 = vunpack.c.l.b16 %v369
        %v411 = vunpack.c.h.b16 %v369
        %v412 = vpack.c.b16 %v386, %v384
        %v413 = vpack.c.b16 %v387, %v385
        %v414 = vpack.c.b16 %v390, %v388
        %v415 = vpack.c.b16 %v391, %v389
        %v416 = vpack.c.b16 %v394, %v392
        %v417 = vpack.c.b16 %v395, %v393
        %v418 = vpack.c.b16 %v398, %v396
        %v419 = vpack.c.b16 %v399, %v397
        %v420 = vpack.c.b16 %v402, %v400
        %v421 = vpack.c.b16 %v403, %v401
        %v422 = vpack.c.b16 %v406, %v404
        %v423 = vpack.c.b16 %v407, %v405
        %v424 = vpack.c.b16 %v410, %v408
        %v425 = vpack.c.b16 %v411, %v409
        %vm438 = vcmask 883712
        %v440 = vsel %vm438, %v355, 0
        %vm442 = vcmask 1045504
        %v444 = vsel %vm442, %v424, 0
        %v447 = vsel %vm442, %v425, 0
        %449 = vmatprep.subr.bf16.mxu0 %v413
        %450 = vmatpush1.bf16.msra.mxu0 %v412
        %451 = vmatprep.subr.bf16.mxu0 %v415
        %452 = vmatpush1.bf16.msra.mxu0 %v414
        %453 = vmatprep.subr.bf16.mxu0 %v417
        %454 = vmatpush1.bf16.msra.mxu0 %v416
        %455 = vmatprep.subr.bf16.mxu0 %v419
        %456 = vmatpush1.bf16.msra.mxu0 %v418
        %457 = vmatprep.subr.bf16.mxu0 %v421
        %458 = vmatpush1.bf16.msra.mxu0 %v420
        %459 = vmatprep.subr.bf16.mxu0 %v423
        %460 = vmatpush1.bf16.msra.mxu0 %v422
        %461 = vmatprep.subr.bf16.mxu0 %v447
        %462 = vmatpush1.bf16.msra.mxu0 %v444
        %463 = vmatprep.subr.bf16.mxu0 0
        %464 = vmatpush1.bf16.msra.mxu0 0
        %465 = vmatprep.subr.bf16.mxu0 0
        %466 = vmatpush1.bf16.msra.mxu0 0
        %467 = vmatprep.subr.bf16.mxu0 0
        %468 = vmatpush1.bf16.msra.mxu0 0
        %469 = vmatprep.subr.bf16.mxu0 0
        %470 = vmatpush1.bf16.msra.mxu0 0
        %471 = vmatprep.subr.bf16.mxu0 0
        %472 = vmatpush1.bf16.msra.mxu0 0
        %473 = vmatprep.subr.bf16.mxu0 0
        %474 = vmatpush1.bf16.msra.mxu0 0
        %475 = vmatprep.subr.bf16.mxu0 0
        %476 = vmatpush1.bf16.msra.mxu0 0
        %477 = vmatprep.subr.bf16.mxu0 0
        %478 = vmatpush1.bf16.msra.mxu0 0
        %479 = vmatprep.subr.bf16.mxu0 0
        %480 = vmatpush1.bf16.msra.mxu0 0
        %481 = vmatprep.mubr.bf16.mxu0 0
        %482 = vmatmul.mubr.bf16.gmra.mrb[0].mxu0 %v440
        %v483 = vpop.f32.mrb[0].mxu0
        %v484 = vadd.f32 0.0, %v483
        %v485 = vpop.f32.mrb[0].mxu0
        %v486 = vadd.f32 0.0, %v485
        %v487 = vpop.f32.mrb[0].mxu0
        %v488 = vpop.f32.mrb[0].mxu0
        %489 = vdwg.mxu0
        %v490 = vadd.f32 %v353, %v484
        %v491 = vadd.f32 %v354, %v486
        %492 = vst [vmem:[%s338] sm:$0xff] %v490
        %493 = vst [vmem:[%s338 + $0x8] sm:$0xff] %v491
        %s494 = smul.u32 2, %s20
        %p495 = scmp.lt.s32.totalorder %s19, 0
        %s496 = scalar_select %p495, %s19, 0
        %p497 = scmp.lt.s32.totalorder %s494, 3
        %s498 = scalar_select %p497, %s494, 3
        %s499 = smul.addr %s496, 4
        %s500 = sadd.s32 %s498, %s499
        %s501 = smul.addr %s500, 8
        %s502 = scalar_lea.vmem %s3, %s501
        // Predicated region
        $region75: #{a_call__.1} parent=65 // pred_check
          %p503 = pneg %p135
        $region76: #{a_call__.1} parent=65 // pred_check_branch
          %505 = sbr.rel (%p503) target = $region78
        $region77: #{a_call__.1} parent=65 // pred_region
          %s506 = smul.u32 2, %s20
        $region78: #{a_call__.1} parent=65 // pred_fallthru
          _
      $region66: #{a_call__.1} parent=5 // pred_fallthru
        _
      %p507 = scmp.le.s32.totalorder 2, %s9
      // Predicated region
      $region79: #{a_call__.1} parent=5 // pred_check
        %p508 = pneg %p507
      $region80: #{a_call__.1} parent=5 // pred_check_branch
        %510 = sbr.rel (%p508) target = $region82
      $region81: #{a_call__.1} parent=5 // pred_region
        %s511 = ssub.s32 %s9, 2
        // Predicated region
        $region83: #{a_call__.1} parent=81 // pred_check
          %p512 = pneg %p141
        $region84: #{a_call__.1} parent=81 // pred_check_branch
          %514 = sbr.rel (%p512) target = $region86
        $region85: #{a_call__.1} parent=81 // pred_region
          %s515 = smul.u32 2, %s23
          %p516 = scmp.lt.s32.totalorder %s22, 0
          %s517 = scalar_select %p516, %s22, 0
          %p518 = scmp.lt.s32.totalorder %s515, 3
          %s519 = scalar_select %p518, %s515, 3
          %s520 = smul.addr %s517, 4
          %s521 = sadd.s32 %s519, %s520
          %s522 = smul.addr %s521, 8
          %s523 = scalar_lea.vmem %s3, %s522
        $region86: #{a_call__.1} parent=81 // pred_fallthru
          _
      $region82: #{a_call__.1} parent=5 // pred_fallthru
        _
    $region6: #{a_call__.1} parent=1 // loop_footer
      %s13 = sadd.s32 1, %s9
    $region7: #{a_call__.1} parent=1 // loop_footer_branch
      %8 = sbr.rel target = $region3
    $region8: #{a_call__.1} parent=1 // loop_exit
      _

</llo_original>
